<compile_context>
chip_gen: v7x
topology: tpu7x:2x2x1
jax: 0.10.0
libtpu: 0.0.40
codegen_flags: <defaults>
</compile_context>

<pallas_src>
import functools
import math

import jax
import jax.numpy as jnp
from jax.experimental import pallas as pl
from jax.experimental.pallas import tpu as pltpu


def _round_up(x, m):
    return ((x + m - 1) // m) * m


# ---------------------------------------------------------------------------
# Kernel: fused sinusoidal embedding + Linear -> SiLU -> Linear
# ---------------------------------------------------------------------------
def _fused_timestep_mlp_kernel(t_ref, w1_ref, b1_ref, w2_ref, b2_ref, o_ref, *,
                               freq_dim, max_period):
    tm = t_ref.shape[0]
    half = freq_dim // 2

    # --- Sinusoidal embedding, built in-register (no HBM emb tensor). ---
    t = t_ref[...]                                                # (TM, 1) f32
    col = jax.lax.broadcasted_iota(jnp.int32, (tm, freq_dim), 1)  # lane index
    fidx = jnp.where(col < half, col, col - half).astype(jnp.float32)
    freqs = jnp.exp(fidx * (-math.log(max_period) / half))        # (TM, freq_dim)
    args = t * freqs                                              # lane-broadcast t
    emb = jnp.where(col < half, jnp.cos(args), jnp.sin(args))
    if freq_dim % 2:  # static: mirrors the torch zero-pad column for odd dims
        emb = jnp.where(col < 2 * half, emb, 0.0)
    x = emb.astype(w1_ref.dtype)                                  # bf16 MXU input

    # --- Linear -> SiLU -> Linear, f32 accumulation throughout. ---
    h = jnp.dot(x, w1_ref[...], preferred_element_type=jnp.float32)
    h = h + b1_ref[...]                                           # (TM,H)+(1,H)
    h = h * jax.nn.sigmoid(h)                                     # SiLU (EUP)
    y = jnp.dot(h.astype(w2_ref.dtype), w2_ref[...],
                preferred_element_type=jnp.float32)
    o_ref[...] = (y + b2_ref[...]).astype(o_ref.dtype)


# ---------------------------------------------------------------------------
# Wrapper
# ---------------------------------------------------------------------------
def timestep_embedder_forward(t, w1, b1, w2, b2, *, max_period=10000.0,
                              tm_max=512):
    """t: (N,) scalar timesteps. w1:(freq_dim,H) b1:(H,) w2:(H,H) b2:(H,).

    Returns (N, H) float32 embeddings. Weights are (in, out) == torch weight.T.
    """
    freq_dim, hidden = w1.shape
    n = t.shape[0]

    # Rows padded only to the sublane multiple; ragged last tile via cdiv grid.
    rows_pad = _round_up(max(n, 1), 8)
    tm = min(tm_max, rows_pad)
    # With plenty of rows, make sure the grid has >= 2 steps so v7x's two
    # TensorCores both get work (not worth it at small N: duplicated weight DMA).
    if pl.cdiv(rows_pad, tm) < 2 and rows_pad >= 512:
        tm = _round_up(pl.cdiv(rows_pad, 2), 8)
    grid_m = pl.cdiv(rows_pad, tm)

    t_pad = jnp.pad(t.astype(jnp.float32), (0, rows_pad - n)).reshape(rows_pad, 1)
    w1_bf = w1.astype(jnp.bfloat16)
    w2_bf = w2.astype(jnp.bfloat16)
    b1_r = b1.astype(jnp.float32).reshape(1, hidden)
    b2_r = b2.astype(jnp.float32).reshape(1, hidden)

    # VMEM budget: single-buffered bf16 weights + f32 biases + double-buffered
    # t/output tiles, 2x headroom, clamped to [32 MiB, 48 MiB].
    need = ((freq_dim * hidden + hidden * hidden) * 2   # bf16 weights (1 buffer)
            + 2 * hidden * 4                            # biases
            + 2 * tm * 4                                # t tiles (x2 buffers)
            + 2 * tm * hidden * 4)                      # out tiles (x2 buffers)
    vmem_limit = int(min(max(2 * need, 32 * 1024 * 1024), 48 * 1024 * 1024))

    cost = pl.CostEstimate(
        flops=int(2 * rows_pad * hidden * (freq_dim + hidden)),
        transcendentals=int(rows_pad * (freq_dim + hidden)),  # exp/cos/sin + sigmoid
        bytes_accessed=int(t_pad.size * 4 + w1_bf.size * 2 + w2_bf.size * 2
                           + (b1_r.size + b2_r.size) * 4 + rows_pad * hidden * 4),
    )

    def _resident(shape):
        # Grid-invariant block: fetched once, single-buffered (no 2x VMEM copy).
        return pl.BlockSpec(shape, lambda i: (0, 0), pipeline_mode=pl.Buffered(1))

    kernel = functools.partial(_fused_timestep_mlp_kernel,
                               freq_dim=freq_dim, max_period=float(max_period))

    out = pl.pallas_call(
        kernel,
        out_shape=jax.ShapeDtypeStruct((rows_pad, hidden), jnp.float32),
        grid=(grid_m,),
        in_specs=[
            pl.BlockSpec((tm, 1), lambda i: (i, 0)),   # streamed timestep tile
            _resident((freq_dim, hidden)),             # w1 (bf16)
            _resident((1, hidden)),                    # b1 (f32)
            _resident((hidden, hidden)),               # w2 (bf16)
            _resident((1, hidden)),                    # b2 (f32)
        ],
        out_specs=pl.BlockSpec((tm, hidden), lambda i: (i, 0)),
        compiler_params=pltpu.CompilerParams(
            dimension_semantics=("parallel",),
            vmem_limit_bytes=vmem_limit,
        ),
        cost_estimate=cost,
    )(t_pad, w1_bf, b1_r, w2_bf, b2_r)

    return out[:n]


# ---------------------------------------------------------------------------
# Pure-JAX references (PyTorch semantics) + parameter init
# ---------------------------------------------------------------------------
def timestep_embedding(t, dim, max_period=10000.0):
    half = dim // 2
    freqs = jnp.exp(
        -math.log(max_period) * jnp.arange(half, dtype=jnp.float32) / half)
    args = t.astype(jnp.float32)[:, None] * freqs[None, :]
    emb = jnp.concatenate([jnp.cos(args), jnp.sin(args)], axis=-1)
    if dim % 2:
        emb = jnp.concatenate([emb, jnp.zeros_like(emb[:, :1])], axis=-1)
    return emb


def reference_forward_f32(t, w1, b1, w2, b2, max_period=10000.0):
    emb = timestep_embedding(t, w1.shape[0], max_period)
    h = emb @ w1 + b1
    h = h * jax.nn.sigmoid(h)
    return h @ w2 + b2


def reference_forward_bf16(t, w1, b1, w2, b2, max_period=10000.0):
    # Mirrors the kernel's mixed precision (bf16 MXU inputs, f32 accumulation).
    emb = timestep_embedding(t, w1.shape[0], max_period).astype(jnp.bfloat16)
    h = jnp.dot(emb, w1.astype(jnp.bfloat16),
                preferred_element_type=jnp.float32) + b1
    h = h * jax.nn.sigmoid(h)
    return jnp.dot(h.astype(jnp.bfloat16), w2.astype(jnp.bfloat16),
                   preferred_element_type=jnp.float32) + b2


def init_params(key, freq_dim, hidden_size):
    k1, k2, k3, k4 = jax.random.split(key, 4)

    def xavier(k, fan_in, fan_out):
        limit = math.sqrt(6.0 / (fan_in + fan_out))
        return jax.random.uniform(k, (fan_in, fan_out), jnp.float32,
                                  minval=-limit, maxval=limit)

    w1 = xavier(k1, freq_dim, hidden_size)
    b1 = 0.02 * jax.random.normal(k3, (hidden_size,), jnp.float32)
    w2 = xavier(k2, hidden_size, hidden_size)
    b2 = 0.02 * jax.random.normal(k4, (hidden_size,), jnp.float32)
    return w1, b1, w2, b2


if __name__ == "__main__":
    # 16 timesteps, freq dim 256 (module default), hidden 128 (lane-dense out).
    N, FREQ_DIM, HIDDEN = 16, 256, 128

    key = jax.random.PRNGKey(0)
    kt, kp = jax.random.split(key)
    t = jax.random.uniform(kt, (N,), jnp.float32, minval=0.0, maxval=1000.0)
    w1, b1, w2, b2 = init_params(kp, FREQ_DIM, HIDDEN)

    out = timestep_embedder_forward(t, w1, b1, w2, b2)
    out = jax.block_until_ready(out)

    assert out.shape == (N, HIDDEN)
    assert bool(jnp.isfinite(out).all())

    # Precision-matched reference (same bf16 quantization): tight tolerance.
    ref_bf16 = reference_forward_bf16(t, w1, b1, w2, b2)
    err_bf16 = float(jnp.max(jnp.abs(out - ref_bf16)))
    assert jnp.allclose(out, ref_bf16, atol=5e-3, rtol=5e-3), err_bf16

    # Full-f32 PyTorch-semantics reference: bf16-appropriate tolerance.
    ref_f32 = reference_forward_f32(t, w1, b1, w2, b2)
    err_f32 = float(jnp.max(jnp.abs(out - ref_f32)))
    assert jnp.allclose(out, ref_f32, atol=5e-2, rtol=5e-2), err_f32

    print("KERNEL_OK")
</pallas_src>

<mosaic_0001>
module attributes {stable_mosaic.version = 11 : i64} {
  func.func @_fused_timestep_mlp_kernel(%arg0: i32, %arg1: memref<16x1xf32, #tpu.memory_space<vmem>>, %arg2: memref<256x128xbf16, #tpu.memory_space<vmem>>, %arg3: memref<1x128xf32, #tpu.memory_space<vmem>>, %arg4: memref<128x128xbf16, #tpu.memory_space<vmem>>, %arg5: memref<1x128xf32, #tpu.memory_space<vmem>>, %arg6: memref<16x128xf32, #tpu.memory_space<vmem>>) attributes {dimension_semantics = [#tpu.dimension_semantics<parallel>], iteration_bounds = array<i64: 1>, scalar_prefetch = 0 : i64, scratch_operands = 0 : i64, tpu.core_type = #tpu.core_type<tc>, window_params = [{transform_indices = @transform_0, window_bounds = array<i64: 16, 1>}, {pipeline_mode = #tpu.pipeline_mode<synchronous>, transform_indices = @transform_1, window_bounds = array<i64: 256, 128>}, {pipeline_mode = #tpu.pipeline_mode<synchronous>, transform_indices = @transform_2, window_bounds = array<i64: 1, 128>}, {pipeline_mode = #tpu.pipeline_mode<synchronous>, transform_indices = @transform_3, window_bounds = array<i64: 128, 128>}, {pipeline_mode = #tpu.pipeline_mode<synchronous>, transform_indices = @transform_4, window_bounds = array<i64: 1, 128>}, {transform_indices = @transform_5, window_bounds = array<i64: 16, 128>}]} {
    %c0 = arith.constant 0 : index
    %c0_0 = arith.constant 0 : index
    %0 = vector.load %arg1[%c0, %c0_0] : memref<16x1xf32, #tpu.memory_space<vmem>>, vector<16x1xf32>
    %1 = tpu.iota {dimensions = array<i32: 1>} : vector<16x256xi32>
    %c128_i32 = arith.constant 128 : i32
    %2 = vector.broadcast %c128_i32 : i32 to vector<16x256xi32>
    %3 = arith.cmpi slt, %1, %2 : vector<16x256xi32>
    %c128_i32_1 = arith.constant 128 : i32
    %4 = vector.broadcast %c128_i32_1 : i32 to vector<16x256xi32>
    %5 = arith.subi %1, %4 : vector<16x256xi32>
    %6 = arith.select %3, %1, %5 : vector<16x256xi1>, vector<16x256xi32>
    %7 = arith.sitofp %6 : vector<16x256xi32> to vector<16x256xf32>
    %cst = arith.constant -0.0719557852 : f32
    %8 = vector.broadcast %cst : f32 to vector<16x256xf32>
    %9 = arith.mulf %7, %8 : vector<16x256xf32>
    %10 = math.exp %9 : vector<16x256xf32>
    %11 = vector.broadcast %0 : vector<16x1xf32> to vector<16x256xf32>
    %12 = arith.mulf %11, %10 : vector<16x256xf32>
    %c128_i32_2 = arith.constant 128 : i32
    %13 = vector.broadcast %c128_i32_2 : i32 to vector<16x256xi32>
    %14 = arith.cmpi slt, %1, %13 : vector<16x256xi32>
    %15 = math.cos %12 : vector<16x256xf32>
    %16 = math.sin %12 : vector<16x256xf32>
    %17 = arith.select %14, %15, %16 : vector<16x256xi1>, vector<16x256xf32>
    %18 = arith.truncf %17 : vector<16x256xf32> to vector<16x256xbf16>
    %c0_3 = arith.constant 0 : index
    %c0_4 = arith.constant 0 : index
    %19 = vector.load %arg2[%c0_3, %c0_4] : memref<256x128xbf16, #tpu.memory_space<vmem>>, vector<256x128xbf16>
    %cst_5 = arith.constant dense<0.000000e+00> : vector<16x128xf32>
    %20 = tpu.matmul %18, %19, %cst_5 {dimension_numbers = #tpu.dot_dimension_numbers<[1], [0], [0], [1], [0, 0, 1, 1], [], []>} : vector<16x256xbf16>, vector<256x128xbf16>, vector<16x128xf32> -> vector<16x128xf32>
    %c0_6 = arith.constant 0 : index
    %c0_7 = arith.constant 0 : index
    %21 = vector.load %arg3[%c0_6, %c0_7] : memref<1x128xf32, #tpu.memory_space<vmem>>, vector<1x128xf32>
    %22 = vector.broadcast %21 : vector<1x128xf32> to vector<16x128xf32>
    %23 = arith.addf %20, %22 : vector<16x128xf32>
    %24 = arith.negf %23 : vector<16x128xf32>
    %25 = math.exp %24 : vector<16x128xf32>
    %cst_8 = arith.constant 1.000000e+00 : f32
    %26 = vector.broadcast %cst_8 : f32 to vector<16x128xf32>
    %27 = arith.addf %26, %25 : vector<16x128xf32>
    %28 = arith.divf %26, %27 : vector<16x128xf32>
    %29 = arith.mulf %23, %28 : vector<16x128xf32>
    %30 = arith.truncf %29 : vector<16x128xf32> to vector<16x128xbf16>
    %c0_9 = arith.constant 0 : index
    %c0_10 = arith.constant 0 : index
    %31 = vector.load %arg4[%c0_9, %c0_10] : memref<128x128xbf16, #tpu.memory_space<vmem>>, vector<128x128xbf16>
    %cst_11 = arith.constant dense<0.000000e+00> : vector<16x128xf32>
    %32 = tpu.matmul %30, %31, %cst_11 {dimension_numbers = #tpu.dot_dimension_numbers<[1], [0], [0], [1], [0, 0, 1, 1], [], []>} : vector<16x128xbf16>, vector<128x128xbf16>, vector<16x128xf32> -> vector<16x128xf32>
    %c0_12 = arith.constant 0 : index
    %c0_13 = arith.constant 0 : index
    %33 = vector.load %arg5[%c0_12, %c0_13] : memref<1x128xf32, #tpu.memory_space<vmem>>, vector<1x128xf32>
    %34 = vector.broadcast %33 : vector<1x128xf32> to vector<16x128xf32>
    %35 = arith.addf %32, %34 : vector<16x128xf32>
    %c0_14 = arith.constant 0 : index
    %c0_15 = arith.constant 0 : index
    %36 = vector.load %arg6[%c0_14, %c0_15] : memref<16x128xf32, #tpu.memory_space<vmem>>, vector<16x128xf32>
    tpu.vector_store %arg6[%c0_14, %c0_15], %35 {strides = array<i32>} : memref<16x128xf32, #tpu.memory_space<vmem>>, vector<16x128xf32>,
    return
  }
  func.func @transform_0(%arg0: i32) -> (i32, i32) {
    %c0_i32 = arith.constant 0 : i32
    %c0_i32_0 = arith.constant 0 : i32
    return %arg0, %c0_i32 : i32, i32
  }
  func.func @transform_1(%arg0: i32) -> (i32, i32) {
    %c0_i32 = arith.constant 0 : i32
    %c0_i32_0 = arith.constant 0 : i32
    %c0_i32_1 = arith.constant 0 : i32
    return %c0_i32, %c0_i32_0 : i32, i32
  }
  func.func @transform_2(%arg0: i32) -> (i32, i32) {
    %c0_i32 = arith.constant 0 : i32
    %c0_i32_0 = arith.constant 0 : i32
    %c0_i32_1 = arith.constant 0 : i32
    return %c0_i32, %c0_i32_0 : i32, i32
  }
  func.func @transform_3(%arg0: i32) -> (i32, i32) {
    %c0_i32 = arith.constant 0 : i32
    %c0_i32_0 = arith.constant 0 : i32
    %c0_i32_1 = arith.constant 0 : i32
    return %c0_i32, %c0_i32_0 : i32, i32
  }
  func.func @transform_4(%arg0: i32) -> (i32, i32) {
    %c0_i32 = arith.constant 0 : i32
    %c0_i32_0 = arith.constant 0 : i32
    %c0_i32_1 = arith.constant 0 : i32
    return %c0_i32, %c0_i32_0 : i32, i32
  }
  func.func @transform_5(%arg0: i32) -> (i32, i32) {
    %c0_i32 = arith.constant 0 : i32
    %c0_i32_0 = arith.constant 0 : i32
    return %arg0, %c0_i32 : i32, i32
  }
}

</mosaic_0001>

<llo_original>
// kernel: tpu_custom_call.1
$region0: #{tpu_custom_call.1}
  #allocation0 [shape = 'u32[]', space=smem, size = 0x4, offset = 0x4, fixed_abs, tag = 'smem constant byte address 0x4 - core index']
  #allocation1 [shape = 'u32[144,128]{1,0:T(1,128)}', space=vmem, size = 0x12000, scoped, tag = 'internal scratch']
  %s0 = inlined_call_operand.vmem [shape: f32[16,1], index: 0, kind: input, shape index: {}]
  %s1 = inlined_call_operand.hbm [shape: bf16[256,128], index: 1, kind: input, shape index: {}]
  %s2 = inlined_call_operand.vmem [shape: f32[1,128], index: 2, kind: input, shape index: {}]
  %s3 = inlined_call_operand.hbm [shape: bf16[128,128], index: 3, kind: input, shape index: {}]
  %s4 = inlined_call_operand.vmem [shape: f32[1,128], index: 4, kind: input, shape index: {}]
  %s5 = inlined_call_operand.hbm [shape: f32[16,128], index: 5, kind: output, shape index: {}]
  %s6 = sld [smem:[#allocation0]]
  $region38: #{tpu_custom_call.1} parent=0
    _
  %s8 = ssub.s32 1, %s6
  %s9 = scalar_select 0, %s8, %s6
  $region1: #{tpu_custom_call.1} parent=0
    #allocation2 [shape = 'u8[65536]{0}', space=vmem, size = 0x10000, scoped, tag = 'input window, operand 1, single buffered']
    #allocation3 [shape = 's32[1]{0}', space=sflag, size = 0x4, scoped, tag = 'scoped memory for tpu_custom_call.1']
    #allocation4 [shape = 's32[1]{0}', space=sflag, size = 0x4, scoped, tag = 'scoped memory for tpu_custom_call.1']
    #allocation5 [shape = 'u8[32768]{0}', space=vmem, size = 0x8000, scoped, tag = 'input window, operand 3, single buffered']
    #allocation6 [shape = 's32[1]{0}', space=sflag, size = 0x4, scoped, tag = 'scoped memory for tpu_custom_call.1']
    #allocation7 [shape = 'u8[8192]{0}', space=vmem, size = 0x2000, scoped, tag = 'output window, operand 0, single buffered']
    %10 = vsyncpa [#allocation3], 0
    %11 = vsyncpa [#allocation6], 0
    %12 = vsyncpa [#allocation4], 0
    // Predicated region
    $region2: #{tpu_custom_call.1} parent=1 // pred_check
      _
    $region3: #{tpu_custom_call.1} parent=1 // pred_check_branch
      %14 = sbr.rel (0) target = $region5
    $region4: #{tpu_custom_call.1} parent=1 // pred_region
      _
    $region5: #{tpu_custom_call.1} parent=1 // pred_fallthru
      _
    // Predicated region
    $region6: #{tpu_custom_call.1} parent=1 // pred_check
      _
    $region7: #{tpu_custom_call.1} parent=1 // pred_check_branch
      %16 = sbr.rel (0) target = $region9
    $region8: #{tpu_custom_call.1} parent=1 // pred_region
      %s18 = ssub.s32 2048, 2048
      %19 = vsyncadd [#allocation3], %s18
      %s20 = sshll.u32 [#allocation2], 4
      %s21 = int_to_ptr.vmem [resolvable:$true] %s20
      %26 = dma.hbm_to_vmem [thread:$0]  %s1, 2048, %s21, [#allocation3], 64, 64, 4
    $region9: #{tpu_custom_call.1} parent=1 // pred_fallthru
      _
    // Predicated region
    $region10: #{tpu_custom_call.1} parent=1 // pred_check
      _
    $region11: #{tpu_custom_call.1} parent=1 // pred_check_branch
      %28 = sbr.rel (0) target = $region13
    $region12: #{tpu_custom_call.1} parent=1 // pred_region
      _
    $region13: #{tpu_custom_call.1} parent=1 // pred_fallthru
      _
    // Predicated region
    $region14: #{tpu_custom_call.1} parent=1 // pred_check
      _
    $region15: #{tpu_custom_call.1} parent=1 // pred_check_branch
      %30 = sbr.rel (0) target = $region17
    $region16: #{tpu_custom_call.1} parent=1 // pred_region
      %s32 = ssub.s32 1024, 1024
      %33 = vsyncadd [#allocation6], %s32
      %s34 = sshll.u32 [#allocation5], 4
      %s35 = int_to_ptr.vmem [resolvable:$true] %s34
      %40 = dma.hbm_to_vmem [thread:$0]  %s3, 1024, %s35, [#allocation6], 64, 64, 4
    $region17: #{tpu_custom_call.1} parent=1 // pred_fallthru
      _
    // Predicated region
    $region18: #{tpu_custom_call.1} parent=1 // pred_check
      _
    $region19: #{tpu_custom_call.1} parent=1 // pred_check_branch
      %42 = sbr.rel (0) target = $region21
    $region20: #{tpu_custom_call.1} parent=1 // pred_region
      _
    $region21: #{tpu_custom_call.1} parent=1 // pred_fallthru
      _
    // Predicated region
    $region22: #{tpu_custom_call.1} parent=1 // pred_check
      _
    $region23: #{tpu_custom_call.1} parent=1 // pred_check_branch
      %44 = sbr.rel (0) target = $region25
    $region24: #{tpu_custom_call.1} parent=1 // pred_region
      %45 = dma.done [#allocation3], 2048
    $region25: #{tpu_custom_call.1} parent=1 // pred_fallthru
      _
    // Predicated region
    $region26: #{tpu_custom_call.1} parent=1 // pred_check
      _
    $region27: #{tpu_custom_call.1} parent=1 // pred_check_branch
      %47 = sbr.rel (0) target = $region29
    $region28: #{tpu_custom_call.1} parent=1 // pred_region
      %48 = dma.done [#allocation6], 1024
    $region29: #{tpu_custom_call.1} parent=1 // pred_fallthru
      _
    %v50 = vld [vmem:[%s0] sm:$0xff]
    %v51 = vld [vmem:[%s0 + $0x8] sm:$0xff]
    %v52 = vlaneseq
    %v53 = vand.u32 %v52, 127
    %v54 = vadd.s32 %v53, 128
    %vm55 = vcmp.lt.s32.totalorder %v53, 128
    %vm56 = vcmp.lt.s32.totalorder %v54, 128
    %v57 = vsub.s32 %v53, 128
    %v58 = vsel %vm55, %v53, %v57
    %v59 = vsel %vm56, %v54, %v53
    %v60 = vcvt.s32.f32 %v58
    %v61 = vcvt.s32.f32 %v59
    %v62 = vmul.f32 %v60, -0.071955785
    %v63 = vmul.f32 %v61, -0.071955785
    %v64 = vmul.f32 %v62, 1.442695
    %v65 = vpow.pop %v64
    %v66 = vmul.f32 %v63, 1.442695
    %v67 = vpow.pop %v66
    %69 = vset.pattern.permute.xlu0 0
    %70 = vperm.xlu0 %69, %v50
    %v71 = vpop.permute.xlu0 %70
    %74 = vset.pattern.permute.xlu0 0
    %75 = vperm.xlu0 %74, %v51
    %v76 = vpop.permute.xlu0 %75
    %v78 = vmul.f32 %v71, %v65
    %v79 = vmul.f32 %v71, %v67
    %v80 = vmul.f32 %v76, %v65
    %v81 = vmul.f32 %v76, %v67
    %v82 = vand.u32 2147483647, %v78
    %vm83 = vcmp.le.f32.partialorder %v82, 0.7853982
    %vm84 = vcmp.lt.s32.totalorder %v78, 0
    %v85 = vand.u32 %v78, 2139095040
    %v86 = vshrl.u32 %v85, 23
    %v87 = vsub.s32 %v86, 127
    %v88 = vand.u32 2147483647, %v78
    %v89 = vand.u32 %v88, 8388607
    %v90 = vor.u32 %v89, 8388608
    %v91 = vsub.s32 0, %v90
    %v92 = vadd.s32 %v87, 1
    %vm93 = vcmp.gt.s32.totalorder %v92, 0
    %v94 = vsel %vm93, %v92, 0
    %v95 = vshrl.u32 %v94, 5
    %v96 = vand.u32 %v94, 31
    %v97 = vsub.s32 32, %v96
    %v98 = vshrl.u32 683565275, %v97
    %v99 = vshll.u32 683565275, %v96
    %v100 = vshrl.u32 2475754826, %v97
    %v101 = vor.u32 %v99, %v100
    %v102 = vshll.u32 2475754826, %v96
    %v103 = vshrl.u32 2131351028, %v97
    %v104 = vor.u32 %v102, %v103
    %v105 = vshll.u32 2131351028, %v96
    %v106 = vshrl.u32 2102212464, %v97
    %v107 = vor.u32 %v105, %v106
    %v108 = vshll.u32 2102212464, %v96
    %v109 = vshrl.u32 920167782, %v97
    %v110 = vor.u32 %v108, %v109
    %v111 = vshll.u32 920167782, %v96
    %v112 = vshrl.u32 1326507024, %v97
    %v113 = vor.u32 %v111, %v112
    %vm114 = vcmp.lt.s32.totalorder %v95, 1
    %vm115 = vcmp.lt.s32.totalorder %v95, 2
    %vm116 = vcmp.lt.s32.totalorder %v95, 3
    %vm117 = vcmp.lt.s32.totalorder %v95, 4
    %v118 = vsel %vm114, %v98, %v101
    %v119 = vsel %vm117, %v107, 2102212464
    %v120 = vsel %vm116, %v104, %v119
    %v121 = vsel %vm115, %v118, %v120
    %v122 = vsel %vm114, %v101, %v104
    %v123 = vsel %vm117, %v110, 920167782
    %v124 = vsel %vm116, %v107, %v123
    %v125 = vsel %vm115, %v122, %v124
    %v126 = vsel %vm114, %v104, %v107
    %v127 = vsel %vm117, %v113, 1326507024
    %v128 = vsel %vm116, %v110, %v127
    %v129 = vsel %vm115, %v126, %v128
    %v130 = vshll.u32 %v90, 8
    %v131 = vmul.u32.u64.compose %v130, %v129
    %v132 = vextract.low.u32 %v131
    %v133 = vextract.high.u32 %v131
    %v134 = vmul.u32.u64.compose %v130, %v125
    %v135 = vextract.low.u32 %v134
    %v136 = vextract.high.u32 %v134
    %v137 = vmul.u32 %v130, %v121
    %v138 = vadd.s32 %v133, %v135
    %vm139 = vc.u32 %v133, %v135
    %v140 = vadd.s32 %v136, 1
    %v141 = vsel %vm139, %v140, %v136
    %v142 = vadd.s32 %v137, %v141
    %v143 = vadd.s32 %v142, 536870912
    %v144 = vshrl.u32 %v143, 30
    %v145 = vshll.u32 %v144, 30
    %v146 = vsub.s32 %v142, %v145
    %vm147 = vcmp.lt.s32.totalorder %v146, 0
    %v148 = vsub.s32 0, %v146
    %v149 = vsel %vm147, %v148, %v146
    %v150 = vclz %v149
    %v151 = vsub.s32 %v150, 2
    %vm152 = vcmp.gt.s32.totalorder 0, %v151
    %v153 = vsel %vm152, 0, %v151
    %v154 = vsub.s32 32, %v153
    %v155 = vshll.u32 %v146, %v153
    %v156 = vshrl.u32 %v138, %v154
    %v157 = vor.u32 %v155, %v156
    %v158 = vsub.s32 4294967266, %v153
    %v159 = vadd.s32 %v158, 127
    %v160 = vshll.u32 %v159, 23
    %v161 = vor.u32 4788187, %v160
    %v162 = vand.u32 2147483647, %v161
    %v164 = vcvt.s32.f32 %v157
    %v165 = vmul.f32 %v164, %v162
    %v166 = vxor.u32 %v165, 2147483648
    %v167 = vsel %vm84, %v166, %v165
    %v168 = vsub.s32 4, %v144
    %v169 = vsel %vm84, %v168, %v144
    %v170 = vsel %vm83, %v78, %v167
    %v171 = vsel %vm83, 0, %v169
    %v172 = vcosq.f32.pop %v170
    %v173 = vsinq.f32.pop %v170
    %vm174 = vweird.f32 %v78
    %v175 = vand.u32 %v171, 3
    %vm176 = vcmp.lt.s32.totalorder %v175, 2
    %vm177 = vcmp.eq.s32.totalorder %v175, 0
    %v178 = vxor.u32 %v173, 2147483648
    %v179 = vsel %vm177, %v172, %v178
    %vm180 = vcmp.eq.s32.totalorder %v175, 2
    %v181 = vxor.u32 %v172, 2147483648
    %v182 = vsel %vm180, %v181, %v173
    %v183 = vsel %vm176, %v179, %v182
    %v184 = vsel %vm174, nan, %v183
    %v185 = vand.u32 2147483647, %v79
    %vm186 = vcmp.le.f32.partialorder %v185, 0.7853982
    %vm187 = vcmp.lt.s32.totalorder %v79, 0
    %v188 = vand.u32 %v79, 2139095040
    %v189 = vshrl.u32 %v188, 23
    %v190 = vsub.s32 %v189, 127
    %v191 = vand.u32 2147483647, %v79
    %v192 = vand.u32 %v191, 8388607
    %v193 = vor.u32 %v192, 8388608
    %v194 = vsub.s32 0, %v193
    %v195 = vadd.s32 %v190, 1
    %vm196 = vcmp.gt.s32.totalorder %v195, 0
    %v197 = vsel %vm196, %v195, 0
    %v198 = vshrl.u32 %v197, 5
    %v199 = vand.u32 %v197, 31
    %v200 = vsub.s32 32, %v199
    %v201 = vshrl.u32 683565275, %v200
    %v202 = vshll.u32 683565275, %v199
    %v203 = vshrl.u32 2475754826, %v200
    %v204 = vor.u32 %v202, %v203
    %v205 = vshll.u32 2475754826, %v199
    %v206 = vshrl.u32 2131351028, %v200
    %v207 = vor.u32 %v205, %v206
    %v208 = vshll.u32 2131351028, %v199
    %v209 = vshrl.u32 2102212464, %v200
    %v210 = vor.u32 %v208, %v209
    %v211 = vshll.u32 2102212464, %v199
    %v212 = vshrl.u32 920167782, %v200
    %v213 = vor.u32 %v211, %v212
    %v214 = vshll.u32 920167782, %v199
    %v215 = vshrl.u32 1326507024, %v200
    %v216 = vor.u32 %v214, %v215
    %vm217 = vcmp.lt.s32.totalorder %v198, 1
    %vm218 = vcmp.lt.s32.totalorder %v198, 2
    %vm219 = vcmp.lt.s32.totalorder %v198, 3
    %vm220 = vcmp.lt.s32.totalorder %v198, 4
    %v221 = vsel %vm217, %v201, %v204
    %v222 = vsel %vm220, %v210, 2102212464
    %v223 = vsel %vm219, %v207, %v222
    %v224 = vsel %vm218, %v221, %v223
    %v225 = vsel %vm217, %v204, %v207
    %v226 = vsel %vm220, %v213, 920167782
    %v227 = vsel %vm219, %v210, %v226
    %v228 = vsel %vm218, %v225, %v227
    %v229 = vsel %vm217, %v207, %v210
    %v230 = vsel %vm220, %v216, 1326507024
    %v231 = vsel %vm219, %v213, %v230
    %v232 = vsel %vm218, %v229, %v231
    %v233 = vshll.u32 %v193, 8
    %v234 = vmul.u32.u64.compose %v233, %v232
    %v235 = vextract.low.u32 %v234
    %v236 = vextract.high.u32 %v234
    %v237 = vmul.u32.u64.compose %v233, %v228
    %v238 = vextract.low.u32 %v237
    %v239 = vextract.high.u32 %v237
    %v240 = vmul.u32 %v233, %v224
    %v241 = vadd.s32 %v236, %v238
    %vm242 = vc.u32 %v236, %v238
    %v243 = vadd.s32 %v239, 1
    %v244 = vsel %vm242, %v243, %v239
    %v245 = vadd.s32 %v240, %v244
    %v246 = vadd.s32 %v245, 536870912
    %v247 = vshrl.u32 %v246, 30
    %v248 = vshll.u32 %v247, 30
    %v249 = vsub.s32 %v245, %v248
    %vm250 = vcmp.lt.s32.totalorder %v249, 0
    %v251 = vsub.s32 0, %v249
    %v252 = vsel %vm250, %v251, %v249
    %v253 = vclz %v252
    %v254 = vsub.s32 %v253, 2
    %vm255 = vcmp.gt.s32.totalorder 0, %v254
    %v256 = vsel %vm255, 0, %v254
    %v257 = vsub.s32 32, %v256
    %v258 = vshll.u32 %v249, %v256
    %v259 = vshrl.u32 %v241, %v257
    %v260 = vor.u32 %v258, %v259
    %v261 = vsub.s32 4294967266, %v256
    %v262 = vadd.s32 %v261, 127
    %v263 = vshll.u32 %v262, 23
    %v264 = vor.u32 4788187, %v263
    %v265 = vand.u32 2147483647, %v264
    %v267 = vcvt.s32.f32 %v260
    %v268 = vmul.f32 %v267, %v265
    %v269 = vxor.u32 %v268, 2147483648
    %v270 = vsel %vm187, %v269, %v268
    %v271 = vsub.s32 4, %v247
    %v272 = vsel %vm187, %v271, %v247
    %v273 = vsel %vm186, %v79, %v270
    %v274 = vsel %vm186, 0, %v272
    %v275 = vcosq.f32.pop %v273
    %v276 = vsinq.f32.pop %v273
    %vm277 = vweird.f32 %v79
    %v278 = vand.u32 %v274, 3
    %vm279 = vcmp.lt.s32.totalorder %v278, 2
    %vm280 = vcmp.eq.s32.totalorder %v278, 0
    %v281 = vxor.u32 %v276, 2147483648
    %v282 = vsel %vm280, %v275, %v281
    %vm283 = vcmp.eq.s32.totalorder %v278, 2
    %v284 = vxor.u32 %v275, 2147483648
    %v285 = vsel %vm283, %v284, %v276
    %v286 = vsel %vm279, %v282, %v285
    %v287 = vsel %vm277, nan, %v286
    %v288 = vand.u32 2147483647, %v80
    %vm289 = vcmp.le.f32.partialorder %v288, 0.7853982
    %vm290 = vcmp.lt.s32.totalorder %v80, 0
    %v291 = vand.u32 %v80, 2139095040
    %v292 = vshrl.u32 %v291, 23
    %v293 = vsub.s32 %v292, 127
    %v294 = vand.u32 2147483647, %v80
    %v295 = vand.u32 %v294, 8388607
    %v296 = vor.u32 %v295, 8388608
    %v297 = vsub.s32 0, %v296
    %v298 = vadd.s32 %v293, 1
    %vm299 = vcmp.gt.s32.totalorder %v298, 0
    %v300 = vsel %vm299, %v298, 0
    %v301 = vshrl.u32 %v300, 5
    %v302 = vand.u32 %v300, 31
    %v303 = vsub.s32 32, %v302
    %v304 = vshrl.u32 683565275, %v303
    %v305 = vshll.u32 683565275, %v302
    %v306 = vshrl.u32 2475754826, %v303
    %v307 = vor.u32 %v305, %v306
    %v308 = vshll.u32 2475754826, %v302
    %v309 = vshrl.u32 2131351028, %v303
    %v310 = vor.u32 %v308, %v309
    %v311 = vshll.u32 2131351028, %v302
    %v312 = vshrl.u32 2102212464, %v303
    %v313 = vor.u32 %v311, %v312
    %v314 = vshll.u32 2102212464, %v302
    %v315 = vshrl.u32 920167782, %v303
    %v316 = vor.u32 %v314, %v315
    %v317 = vshll.u32 920167782, %v302
    %v318 = vshrl.u32 1326507024, %v303
    %v319 = vor.u32 %v317, %v318
    %vm320 = vcmp.lt.s32.totalorder %v301, 1
    %vm321 = vcmp.lt.s32.totalorder %v301, 2
    %vm322 = vcmp.lt.s32.totalorder %v301, 3
    %vm323 = vcmp.lt.s32.totalorder %v301, 4
    %v324 = vsel %vm320, %v304, %v307
    %v325 = vsel %vm323, %v313, 2102212464
    %v326 = vsel %vm322, %v310, %v325
    %v327 = vsel %vm321, %v324, %v326
    %v328 = vsel %vm320, %v307, %v310
    %v329 = vsel %vm323, %v316, 920167782
    %v330 = vsel %vm322, %v313, %v329
    %v331 = vsel %vm321, %v328, %v330
    %v332 = vsel %vm320, %v310, %v313
    %v333 = vsel %vm323, %v319, 1326507024
    %v334 = vsel %vm322, %v316, %v333
    %v335 = vsel %vm321, %v332, %v334
    %v336 = vshll.u32 %v296, 8
    %v337 = vmul.u32.u64.compose %v336, %v335
    %v338 = vextract.low.u32 %v337
    %v339 = vextract.high.u32 %v337
    %v340 = vmul.u32.u64.compose %v336, %v331
    %v341 = vextract.low.u32 %v340
    %v342 = vextract.high.u32 %v340
    %v343 = vmul.u32 %v336, %v327
    %v344 = vadd.s32 %v339, %v341
    %vm345 = vc.u32 %v339, %v341
    %v346 = vadd.s32 %v342, 1
    %v347 = vsel %vm345, %v346, %v342
    %v348 = vadd.s32 %v343, %v347
    %v349 = vadd.s32 %v348, 536870912
    %v350 = vshrl.u32 %v349, 30
    %v351 = vshll.u32 %v350, 30
    %v352 = vsub.s32 %v348, %v351
    %vm353 = vcmp.lt.s32.totalorder %v352, 0
    %v354 = vsub.s32 0, %v352
    %v355 = vsel %vm353, %v354, %v352
    %v356 = vclz %v355
    %v357 = vsub.s32 %v356, 2
    %vm358 = vcmp.gt.s32.totalorder 0, %v357
    %v359 = vsel %vm358, 0, %v357
    %v360 = vsub.s32 32, %v359
    %v361 = vshll.u32 %v352, %v359
    %v362 = vshrl.u32 %v344, %v360
    %v363 = vor.u32 %v361, %v362
    %v364 = vsub.s32 4294967266, %v359
    %v365 = vadd.s32 %v364, 127
    %v366 = vshll.u32 %v365, 23
    %v367 = vor.u32 4788187, %v366
    %v368 = vand.u32 2147483647, %v367
    %v370 = vcvt.s32.f32 %v363
    %v371 = vmul.f32 %v370, %v368
    %v372 = vxor.u32 %v371, 2147483648
    %v373 = vsel %vm290, %v372, %v371
    %v374 = vsub.s32 4, %v350
    %v375 = vsel %vm290, %v374, %v350
    %v376 = vsel %vm289, %v80, %v373
    %v377 = vsel %vm289, 0, %v375
    %v378 = vcosq.f32.pop %v376
    %v379 = vsinq.f32.pop %v376
    %vm380 = vweird.f32 %v80
    %v381 = vand.u32 %v377, 3
    %vm382 = vcmp.lt.s32.totalorder %v381, 2
    %vm383 = vcmp.eq.s32.totalorder %v381, 0
    %v384 = vxor.u32 %v379, 2147483648
    %v385 = vsel %vm383, %v378, %v384
    %vm386 = vcmp.eq.s32.totalorder %v381, 2
    %v387 = vxor.u32 %v378, 2147483648
    %v388 = vsel %vm386, %v387, %v379
    %v389 = vsel %vm382, %v385, %v388
    %v390 = vsel %vm380, nan, %v389
    %v391 = vand.u32 2147483647, %v81
    %vm392 = vcmp.le.f32.partialorder %v391, 0.7853982
    %vm393 = vcmp.lt.s32.totalorder %v81, 0
    %v394 = vand.u32 %v81, 2139095040
    %v395 = vshrl.u32 %v394, 23
    %v396 = vsub.s32 %v395, 127
    %v397 = vand.u32 2147483647, %v81
    %v398 = vand.u32 %v397, 8388607
    %v399 = vor.u32 %v398, 8388608
    %v400 = vsub.s32 0, %v399
    %v401 = vadd.s32 %v396, 1
    %vm402 = vcmp.gt.s32.totalorder %v401, 0
    %v403 = vsel %vm402, %v401, 0
    %v404 = vshrl.u32 %v403, 5
    %v405 = vand.u32 %v403, 31
    %v406 = vsub.s32 32, %v405
    %v407 = vshrl.u32 683565275, %v406
    %v408 = vshll.u32 683565275, %v405
    %v409 = vshrl.u32 2475754826, %v406
    %v410 = vor.u32 %v408, %v409
    %v411 = vshll.u32 2475754826, %v405
    %v412 = vshrl.u32 2131351028, %v406
    %v413 = vor.u32 %v411, %v412
    %v414 = vshll.u32 2131351028, %v405
    %v415 = vshrl.u32 2102212464, %v406
    %v416 = vor.u32 %v414, %v415
    %v417 = vshll.u32 2102212464, %v405
    %v418 = vshrl.u32 920167782, %v406
    %v419 = vor.u32 %v417, %v418
    %v420 = vshll.u32 920167782, %v405
    %v421 = vshrl.u32 1326507024, %v406
    %v422 = vor.u32 %v420, %v421
    %vm423 = vcmp.lt.s32.totalorder %v404, 1
    %vm424 = vcmp.lt.s32.totalorder %v404, 2
    %vm425 = vcmp.lt.s32.totalorder %v404, 3
    %vm426 = vcmp.lt.s32.totalorder %v404, 4
    %v427 = vsel %vm423, %v407, %v410
    %v428 = vsel %vm426, %v416, 2102212464
    %v429 = vsel %vm425, %v413, %v428
    %v430 = vsel %vm424, %v427, %v429
    %v431 = vsel %vm423, %v410, %v413
    %v432 = vsel %vm426, %v419, 920167782
    %v433 = vsel %vm425, %v416, %v432
    %v434 = vsel %vm424, %v431, %v433
    %v435 = vsel %vm423, %v413, %v416
    %v436 = vsel %vm426, %v422, 1326507024
    %v437 = vsel %vm425, %v419, %v436
    %v438 = vsel %vm424, %v435, %v437
    %v439 = vshll.u32 %v399, 8
    %v440 = vmul.u32.u64.compose %v439, %v438
    %v441 = vextract.low.u32 %v440
    %v442 = vextract.high.u32 %v440
    %v443 = vmul.u32.u64.compose %v439, %v434
    %v444 = vextract.low.u32 %v443
    %v445 = vextract.high.u32 %v443
    %v446 = vmul.u32 %v439, %v430
    %v447 = vadd.s32 %v442, %v444
    %vm448 = vc.u32 %v442, %v444
    %v449 = vadd.s32 %v445, 1
    %v450 = vsel %vm448, %v449, %v445
    %v451 = vadd.s32 %v446, %v450
    %v452 = vadd.s32 %v451, 536870912
    %v453 = vshrl.u32 %v452, 30
    %v454 = vshll.u32 %v453, 30
    %v455 = vsub.s32 %v451, %v454
    %vm456 = vcmp.lt.s32.totalorder %v455, 0
    %v457 = vsub.s32 0, %v455
    %v458 = vsel %vm456, %v457, %v455
    %v459 = vclz %v458
    %v460 = vsub.s32 %v459, 2
    %vm461 = vcmp.gt.s32.totalorder 0, %v460
    %v462 = vsel %vm461, 0, %v460
    %v463 = vsub.s32 32, %v462
    %v464 = vshll.u32 %v455, %v462
    %v465 = vshrl.u32 %v447, %v463
    %v466 = vor.u32 %v464, %v465
    %v467 = vsub.s32 4294967266, %v462
    %v468 = vadd.s32 %v467, 127
    %v469 = vshll.u32 %v468, 23
    %v470 = vor.u32 4788187, %v469
    %v471 = vand.u32 2147483647, %v470
    %v473 = vcvt.s32.f32 %v466
    %v474 = vmul.f32 %v473, %v471
    %v475 = vxor.u32 %v474, 2147483648
    %v476 = vsel %vm393, %v475, %v474
    %v477 = vsub.s32 4, %v453
    %v478 = vsel %vm393, %v477, %v453
    %v479 = vsel %vm392, %v81, %v476
    %v480 = vsel %vm392, 0, %v478
    %v481 = vcosq.f32.pop %v479
    %v482 = vsinq.f32.pop %v479
    %vm483 = vweird.f32 %v81
    %v484 = vand.u32 %v480, 3
    %vm485 = vcmp.lt.s32.totalorder %v484, 2
    %vm486 = vcmp.eq.s32.totalorder %v484, 0
    %v487 = vxor.u32 %v482, 2147483648
    %v488 = vsel %vm486, %v481, %v487
    %vm489 = vcmp.eq.s32.totalorder %v484, 2
    %v490 = vxor.u32 %v481, 2147483648
    %v491 = vsel %vm489, %v490, %v482
    %v492 = vsel %vm485, %v488, %v491
    %v493 = vsel %vm483, nan, %v492
    %v494 = vand.u32 2147483647, %v78
    %vm495 = vcmp.le.f32.partialorder %v494, 0.7853982
    %vm496 = vcmp.lt.s32.totalorder %v78, 0
    %v497 = vand.u32 %v78, 2139095040
    %v498 = vshrl.u32 %v497, 23
    %v499 = vsub.s32 %v498, 127
    %v500 = vand.u32 2147483647, %v78
    %v501 = vand.u32 %v500, 8388607
    %v502 = vor.u32 %v501, 8388608
    %v503 = vsub.s32 0, %v502
    %v504 = vadd.s32 %v499, 1
    %vm505 = vcmp.gt.s32.totalorder %v504, 0
    %v506 = vsel %vm505, %v504, 0
    %v507 = vshrl.u32 %v506, 5
    %v508 = vand.u32 %v506, 31
    %v509 = vsub.s32 32, %v508
    %v510 = vshrl.u32 683565275, %v509
    %v511 = vshll.u32 683565275, %v508
    %v512 = vshrl.u32 2475754826, %v509
    %v513 = vor.u32 %v511, %v512
    %v514 = vshll.u32 2475754826, %v508
    %v515 = vshrl.u32 2131351028, %v509
    %v516 = vor.u32 %v514, %v515
    %v517 = vshll.u32 2131351028, %v508
    %v518 = vshrl.u32 2102212464, %v509
    %v519 = vor.u32 %v517, %v518
    %v520 = vshll.u32 2102212464, %v508
    %v521 = vshrl.u32 920167782, %v509
    %v522 = vor.u32 %v520, %v521
    %v523 = vshll.u32 920167782, %v508
    %v524 = vshrl.u32 1326507024, %v509
    %v525 = vor.u32 %v523, %v524
    %vm526 = vcmp.lt.s32.totalorder %v507, 1
    %vm527 = vcmp.lt.s32.totalorder %v507, 2
    %vm528 = vcmp.lt.s32.totalorder %v507, 3
    %vm529 = vcmp.lt.s32.totalorder %v507, 4
    %v530 = vsel %vm526, %v510, %v513
    %v531 = vsel %vm529, %v519, 2102212464
    %v532 = vsel %vm528, %v516, %v531
    %v533 = vsel %vm527, %v530, %v532
    %v534 = vsel %vm526, %v513, %v516
    %v535 = vsel %vm529, %v522, 920167782
    %v536 = vsel %vm528, %v519, %v535
    %v537 = vsel %vm527, %v534, %v536
    %v538 = vsel %vm526, %v516, %v519
    %v539 = vsel %vm529, %v525, 1326507024
    %v540 = vsel %vm528, %v522, %v539
    %v541 = vsel %vm527, %v538, %v540
    %v542 = vshll.u32 %v502, 8
    %v543 = vmul.u32.u64.compose %v542, %v541
    %v544 = vextract.low.u32 %v543
    %v545 = vextract.high.u32 %v543
    %v546 = vmul.u32.u64.compose %v542, %v537
    %v547 = vextract.low.u32 %v546
    %v548 = vextract.high.u32 %v546
    %v549 = vmul.u32 %v542, %v533
    %v550 = vadd.s32 %v545, %v547
    %vm551 = vc.u32 %v545, %v547
    %v552 = vadd.s32 %v548, 1
    %v553 = vsel %vm551, %v552, %v548
    %v554 = vadd.s32 %v549, %v553
    %v555 = vadd.s32 %v554, 536870912
    %v556 = vshrl.u32 %v555, 30
    %v557 = vshll.u32 %v556, 30
    %v558 = vsub.s32 %v554, %v557
    %vm559 = vcmp.lt.s32.totalorder %v558, 0
    %v560 = vsub.s32 0, %v558
    %v561 = vsel %vm559, %v560, %v558
    %v562 = vclz %v561
    %v563 = vsub.s32 %v562, 2
    %vm564 = vcmp.gt.s32.totalorder 0, %v563
    %v565 = vsel %vm564, 0, %v563
    %v566 = vsub.s32 32, %v565
    %v567 = vshll.u32 %v558, %v565
    %v568 = vshrl.u32 %v550, %v566
    %v569 = vor.u32 %v567, %v568
    %v570 = vsub.s32 4294967266, %v565
    %v571 = vadd.s32 %v570, 127
    %v572 = vshll.u32 %v571, 23
    %v573 = vor.u32 4788187, %v572
    %v574 = vand.u32 2147483647, %v573
    %v576 = vcvt.s32.f32 %v569
    %v577 = vmul.f32 %v576, %v574
    %v578 = vxor.u32 %v577, 2147483648
    %v579 = vsel %vm496, %v578, %v577
    %v580 = vsub.s32 4, %v556
    %v581 = vsel %vm496, %v580, %v556
    %v582 = vsel %vm495, %v78, %v579
    %v583 = vsel %vm495, 0, %v581
    %v584 = vcosq.f32.pop %v582
    %v585 = vsinq.f32.pop %v582
    %vm586 = vweird.f32 %v78
    %v587 = vadd.s32 %v583, 3
    %v588 = vand.u32 %v587, 3
    %vm589 = vcmp.lt.s32.totalorder %v588, 2
    %vm590 = vcmp.eq.s32.totalorder %v588, 0
    %v591 = vxor.u32 %v585, 2147483648
    %v592 = vsel %vm590, %v584, %v591
    %vm593 = vcmp.eq.s32.totalorder %v588, 2
    %v594 = vxor.u32 %v584, 2147483648
    %v595 = vsel %vm593, %v594, %v585
    %v596 = vsel %vm589, %v592, %v595
    %v597 = vsel %vm586, nan, %v596
    %v598 = vand.u32 2147483647, %v79
    %vm599 = vcmp.le.f32.partialorder %v598, 0.7853982
    %vm600 = vcmp.lt.s32.totalorder %v79, 0
    %v601 = vand.u32 %v79, 2139095040
    %v602 = vshrl.u32 %v601, 23
    %v603 = vsub.s32 %v602, 127
    %v604 = vand.u32 2147483647, %v79
    %v605 = vand.u32 %v604, 8388607
    %v606 = vor.u32 %v605, 8388608
    %v607 = vsub.s32 0, %v606
    %v608 = vadd.s32 %v603, 1
    %vm609 = vcmp.gt.s32.totalorder %v608, 0
    %v610 = vsel %vm609, %v608, 0
    %v611 = vshrl.u32 %v610, 5
    %v612 = vand.u32 %v610, 31
    %v613 = vsub.s32 32, %v612
    %v614 = vshrl.u32 683565275, %v613
    %v615 = vshll.u32 683565275, %v612
    %v616 = vshrl.u32 2475754826, %v613
    %v617 = vor.u32 %v615, %v616
    %v618 = vshll.u32 2475754826, %v612
    %v619 = vshrl.u32 2131351028, %v613
    %v620 = vor.u32 %v618, %v619
    %v621 = vshll.u32 2131351028, %v612
    %v622 = vshrl.u32 2102212464, %v613
    %v623 = vor.u32 %v621, %v622
    %v624 = vshll.u32 2102212464, %v612
    %v625 = vshrl.u32 920167782, %v613
    %v626 = vor.u32 %v624, %v625
    %v627 = vshll.u32 920167782, %v612
    %v628 = vshrl.u32 1326507024, %v613
    %v629 = vor.u32 %v627, %v628
    %vm630 = vcmp.lt.s32.totalorder %v611, 1
    %vm631 = vcmp.lt.s32.totalorder %v611, 2
    %vm632 = vcmp.lt.s32.totalorder %v611, 3
    %vm633 = vcmp.lt.s32.totalorder %v611, 4
    %v634 = vsel %vm630, %v614, %v617
    %v635 = vsel %vm633, %v623, 2102212464
    %v636 = vsel %vm632, %v620, %v635
    %v637 = vsel %vm631, %v634, %v636
    %v638 = vsel %vm630, %v617, %v620
    %v639 = vsel %vm633, %v626, 920167782
    %v640 = vsel %vm632, %v623, %v639
    %v641 = vsel %vm631, %v638, %v640
    %v642 = vsel %vm630, %v620, %v623
    %v643 = vsel %vm633, %v629, 1326507024
    %v644 = vsel %vm632, %v626, %v643
    %v645 = vsel %vm631, %v642, %v644
    %v646 = vshll.u32 %v606, 8
    %v647 = vmul.u32.u64.compose %v646, %v645
    %v648 = vextract.low.u32 %v647
    %v649 = vextract.high.u32 %v647
    %v650 = vmul.u32.u64.compose %v646, %v641
    %v651 = vextract.low.u32 %v650
    %v652 = vextract.high.u32 %v650
    %v653 = vmul.u32 %v646, %v637
    %v654 = vadd.s32 %v649, %v651
    %vm655 = vc.u32 %v649, %v651
    %v656 = vadd.s32 %v652, 1
    %v657 = vsel %vm655, %v656, %v652
    %v658 = vadd.s32 %v653, %v657
    %v659 = vadd.s32 %v658, 536870912
    %v660 = vshrl.u32 %v659, 30
    %v661 = vshll.u32 %v660, 30
    %v662 = vsub.s32 %v658, %v661
    %vm663 = vcmp.lt.s32.totalorder %v662, 0
    %v664 = vsub.s32 0, %v662
    %v665 = vsel %vm663, %v664, %v662
    %v666 = vclz %v665
    %v667 = vsub.s32 %v666, 2
    %vm668 = vcmp.gt.s32.totalorder 0, %v667
    %v669 = vsel %vm668, 0, %v667
    %v670 = vsub.s32 32, %v669
    %v671 = vshll.u32 %v662, %v669
    %v672 = vshrl.u32 %v654, %v670
    %v673 = vor.u32 %v671, %v672
    %v674 = vsub.s32 4294967266, %v669
    %v675 = vadd.s32 %v674, 127
    %v676 = vshll.u32 %v675, 23
    %v677 = vor.u32 4788187, %v676
    %v678 = vand.u32 2147483647, %v677
    %v680 = vcvt.s32.f32 %v673
    %v681 = vmul.f32 %v680, %v678
    %v682 = vxor.u32 %v681, 2147483648
    %v683 = vsel %vm600, %v682, %v681
    %v684 = vsub.s32 4, %v660
    %v685 = vsel %vm600, %v684, %v660
    %v686 = vsel %vm599, %v79, %v683
    %v687 = vsel %vm599, 0, %v685
    %v688 = vcosq.f32.pop %v686
    %v689 = vsinq.f32.pop %v686
    %vm690 = vweird.f32 %v79
    %v691 = vadd.s32 %v687, 3
    %v692 = vand.u32 %v691, 3
    %vm693 = vcmp.lt.s32.totalorder %v692, 2
    %vm694 = vcmp.eq.s32.totalorder %v692, 0
    %v695 = vxor.u32 %v689, 2147483648
    %v696 = vsel %vm694, %v688, %v695
    %vm697 = vcmp.eq.s32.totalorder %v692, 2
    %v698 = vxor.u32 %v688, 2147483648
    %v699 = vsel %vm697, %v698, %v689
    %v700 = vsel %vm693, %v696, %v699
    %v701 = vsel %vm690, nan, %v700
    %v702 = vand.u32 2147483647, %v80
    %vm703 = vcmp.le.f32.partialorder %v702, 0.7853982
    %vm704 = vcmp.lt.s32.totalorder %v80, 0
    %v705 = vand.u32 %v80, 2139095040
    %v706 = vshrl.u32 %v705, 23
    %v707 = vsub.s32 %v706, 127
    %v708 = vand.u32 2147483647, %v80
    %v709 = vand.u32 %v708, 8388607
    %v710 = vor.u32 %v709, 8388608
    %v711 = vsub.s32 0, %v710
    %v712 = vadd.s32 %v707, 1
    %vm713 = vcmp.gt.s32.totalorder %v712, 0
    %v714 = vsel %vm713, %v712, 0
    %v715 = vshrl.u32 %v714, 5
    %v716 = vand.u32 %v714, 31
    %v717 = vsub.s32 32, %v716
    %v718 = vshrl.u32 683565275, %v717
    %v719 = vshll.u32 683565275, %v716
    %v720 = vshrl.u32 2475754826, %v717
    %v721 = vor.u32 %v719, %v720
    %v722 = vshll.u32 2475754826, %v716
    %v723 = vshrl.u32 2131351028, %v717
    %v724 = vor.u32 %v722, %v723
    %v725 = vshll.u32 2131351028, %v716
    %v726 = vshrl.u32 2102212464, %v717
    %v727 = vor.u32 %v725, %v726
    %v728 = vshll.u32 2102212464, %v716
    %v729 = vshrl.u32 920167782, %v717
    %v730 = vor.u32 %v728, %v729
    %v731 = vshll.u32 920167782, %v716
    %v732 = vshrl.u32 1326507024, %v717
    %v733 = vor.u32 %v731, %v732
    %vm734 = vcmp.lt.s32.totalorder %v715, 1
    %vm735 = vcmp.lt.s32.totalorder %v715, 2
    %vm736 = vcmp.lt.s32.totalorder %v715, 3
    %vm737 = vcmp.lt.s32.totalorder %v715, 4
    %v738 = vsel %vm734, %v718, %v721
    %v739 = vsel %vm737, %v727, 2102212464
    %v740 = vsel %vm736, %v724, %v739
    %v741 = vsel %vm735, %v738, %v740
    %v742 = vsel %vm734, %v721, %v724
    %v743 = vsel %vm737, %v730, 920167782
    %v744 = vsel %vm736, %v727, %v743
    %v745 = vsel %vm735, %v742, %v744
    %v746 = vsel %vm734, %v724, %v727
    %v747 = vsel %vm737, %v733, 1326507024
    %v748 = vsel %vm736, %v730, %v747
    %v749 = vsel %vm735, %v746, %v748
    %v750 = vshll.u32 %v710, 8
    %v751 = vmul.u32.u64.compose %v750, %v749
    %v752 = vextract.low.u32 %v751
    %v753 = vextract.high.u32 %v751
    %v754 = vmul.u32.u64.compose %v750, %v745
    %v755 = vextract.low.u32 %v754
    %v756 = vextract.high.u32 %v754
    %v757 = vmul.u32 %v750, %v741
    %v758 = vadd.s32 %v753, %v755
    %vm759 = vc.u32 %v753, %v755
    %v760 = vadd.s32 %v756, 1
    %v761 = vsel %vm759, %v760, %v756
    %v762 = vadd.s32 %v757, %v761
    %v763 = vadd.s32 %v762, 536870912
    %v764 = vshrl.u32 %v763, 30
    %v765 = vshll.u32 %v764, 30
    %v766 = vsub.s32 %v762, %v765
    %vm767 = vcmp.lt.s32.totalorder %v766, 0
    %v768 = vsub.s32 0, %v766
    %v769 = vsel %vm767, %v768, %v766
    %v770 = vclz %v769
    %v771 = vsub.s32 %v770, 2
    %vm772 = vcmp.gt.s32.totalorder 0, %v771
    %v773 = vsel %vm772, 0, %v771
    %v774 = vsub.s32 32, %v773
    %v775 = vshll.u32 %v766, %v773
    %v776 = vshrl.u32 %v758, %v774
    %v777 = vor.u32 %v775, %v776
    %v778 = vsub.s32 4294967266, %v773
    %v779 = vadd.s32 %v778, 127
    %v780 = vshll.u32 %v779, 23
    %v781 = vor.u32 4788187, %v780
    %v782 = vand.u32 2147483647, %v781
    %v784 = vcvt.s32.f32 %v777
    %v785 = vmul.f32 %v784, %v782
    %v786 = vxor.u32 %v785, 2147483648
    %v787 = vsel %vm704, %v786, %v785
    %v788 = vsub.s32 4, %v764
    %v789 = vsel %vm704, %v788, %v764
    %v790 = vsel %vm703, %v80, %v787
    %v791 = vsel %vm703, 0, %v789
    %v792 = vcosq.f32.pop %v790
    %v793 = vsinq.f32.pop %v790
    %vm794 = vweird.f32 %v80
    %v795 = vadd.s32 %v791, 3
    %v796 = vand.u32 %v795, 3
    %vm797 = vcmp.lt.s32.totalorder %v796, 2
    %vm798 = vcmp.eq.s32.totalorder %v796, 0
    %v799 = vxor.u32 %v793, 2147483648
    %v800 = vsel %vm798, %v792, %v799
    %vm801 = vcmp.eq.s32.totalorder %v796, 2
    %v802 = vxor.u32 %v792, 2147483648
    %v803 = vsel %vm801, %v802, %v793
    %v804 = vsel %vm797, %v800, %v803
    %v805 = vsel %vm794, nan, %v804
    %v806 = vand.u32 2147483647, %v81
    %vm807 = vcmp.le.f32.partialorder %v806, 0.7853982
    %vm808 = vcmp.lt.s32.totalorder %v81, 0
    %v809 = vand.u32 %v81, 2139095040
    %v810 = vshrl.u32 %v809, 23
    %v811 = vsub.s32 %v810, 127
    %v812 = vand.u32 2147483647, %v81
    %v813 = vand.u32 %v812, 8388607
    %v814 = vor.u32 %v813, 8388608
    %v815 = vsub.s32 0, %v814
    %v816 = vadd.s32 %v811, 1
    %vm817 = vcmp.gt.s32.totalorder %v816, 0
    %v818 = vsel %vm817, %v816, 0
    %v819 = vshrl.u32 %v818, 5
    %v820 = vand.u32 %v818, 31
    %v821 = vsub.s32 32, %v820
    %v822 = vshrl.u32 683565275, %v821
    %v823 = vshll.u32 683565275, %v820
    %v824 = vshrl.u32 2475754826, %v821
    %v825 = vor.u32 %v823, %v824
    %v826 = vshll.u32 2475754826, %v820
    %v827 = vshrl.u32 2131351028, %v821
    %v828 = vor.u32 %v826, %v827
    %v829 = vshll.u32 2131351028, %v820
    %v830 = vshrl.u32 2102212464, %v821
    %v831 = vor.u32 %v829, %v830
    %v832 = vshll.u32 2102212464, %v820
    %v833 = vshrl.u32 920167782, %v821
    %v834 = vor.u32 %v832, %v833
    %v835 = vshll.u32 920167782, %v820
    %v836 = vshrl.u32 1326507024, %v821
    %v837 = vor.u32 %v835, %v836
    %vm838 = vcmp.lt.s32.totalorder %v819, 1
    %vm839 = vcmp.lt.s32.totalorder %v819, 2
    %vm840 = vcmp.lt.s32.totalorder %v819, 3
    %vm841 = vcmp.lt.s32.totalorder %v819, 4
    %v842 = vsel %vm838, %v822, %v825
    %v843 = vsel %vm841, %v831, 2102212464
    %v844 = vsel %vm840, %v828, %v843
    %v845 = vsel %vm839, %v842, %v844
    %v846 = vsel %vm838, %v825, %v828
    %v847 = vsel %vm841, %v834, 920167782
    %v848 = vsel %vm840, %v831, %v847
    %v849 = vsel %vm839, %v846, %v848
    %v850 = vsel %vm838, %v828, %v831
    %v851 = vsel %vm841, %v837, 1326507024
    %v852 = vsel %vm840, %v834, %v851
    %v853 = vsel %vm839, %v850, %v852
    %v854 = vshll.u32 %v814, 8
    %v855 = vmul.u32.u64.compose %v854, %v853
    %v856 = vextract.low.u32 %v855
    %v857 = vextract.high.u32 %v855
    %v858 = vmul.u32.u64.compose %v854, %v849
    %v859 = vextract.low.u32 %v858
    %v860 = vextract.high.u32 %v858
    %v861 = vmul.u32 %v854, %v845
    %v862 = vadd.s32 %v857, %v859
    %vm863 = vc.u32 %v857, %v859
    %v864 = vadd.s32 %v860, 1
    %v865 = vsel %vm863, %v864, %v860
    %v866 = vadd.s32 %v861, %v865
    %v867 = vadd.s32 %v866, 536870912
    %v868 = vshrl.u32 %v867, 30
    %v869 = vshll.u32 %v868, 30
    %v870 = vsub.s32 %v866, %v869
    %vm871 = vcmp.lt.s32.totalorder %v870, 0
    %v872 = vsub.s32 0, %v870
    %v873 = vsel %vm871, %v872, %v870
    %v874 = vclz %v873
    %v875 = vsub.s32 %v874, 2
    %vm876 = vcmp.gt.s32.totalorder 0, %v875
    %v877 = vsel %vm876, 0, %v875
    %v878 = vsub.s32 32, %v877
    %v879 = vshll.u32 %v870, %v877
    %v880 = vshrl.u32 %v862, %v878
    %v881 = vor.u32 %v879, %v880
    %v882 = vsub.s32 4294967266, %v877
    %v883 = vadd.s32 %v882, 127
    %v884 = vshll.u32 %v883, 23
    %v885 = vor.u32 4788187, %v884
    %v886 = vand.u32 2147483647, %v885
    %v888 = vcvt.s32.f32 %v881
    %v889 = vmul.f32 %v888, %v886
    %v890 = vxor.u32 %v889, 2147483648
    %v891 = vsel %vm808, %v890, %v889
    %v892 = vsub.s32 4, %v868
    %v893 = vsel %vm808, %v892, %v868
    %v894 = vsel %vm807, %v81, %v891
    %v895 = vsel %vm807, 0, %v893
    %v896 = vcosq.f32.pop %v894
    %v897 = vsinq.f32.pop %v894
    %vm898 = vweird.f32 %v81
    %v899 = vadd.s32 %v895, 3
    %v900 = vand.u32 %v899, 3
    %vm901 = vcmp.lt.s32.totalorder %v900, 2
    %vm902 = vcmp.eq.s32.totalorder %v900, 0
    %v903 = vxor.u32 %v897, 2147483648
    %v904 = vsel %vm902, %v896, %v903
    %vm905 = vcmp.eq.s32.totalorder %v900, 2
    %v906 = vxor.u32 %v896, 2147483648
    %v907 = vsel %vm905, %v906, %v897
    %v908 = vsel %vm901, %v904, %v907
    %v909 = vsel %vm898, nan, %v908
    %v910 = vsel %vm55, %v184, %v597
    %v911 = vsel %vm56, %v287, %v701
    %v912 = vsel %vm55, %v390, %v805
    %v913 = vsel %vm56, %v493, %v909
    %v914 = vpack.c.bf16 %v912, %v910
    %v915 = vpack.c.bf16 %v913, %v911
    %v916 = vld [vmem:[#allocation2] sm:$0xf]
    %v917 = vld [vmem:[#allocation2 + $0x4] sm:$0xf]
    %v918 = vld [vmem:[#allocation2 + $0x8] sm:$0xf]
    %v919 = vld [vmem:[#allocation2 + $0xc] sm:$0xf]
    %v920 = vld [vmem:[#allocation2 + $0x10] sm:$0xf]
    %v921 = vld [vmem:[#allocation2 + $0x14] sm:$0xf]
    %v922 = vld [vmem:[#allocation2 + $0x18] sm:$0xf]
    %v923 = vld [vmem:[#allocation2 + $0x1c] sm:$0xf]
    %v924 = vld [vmem:[#allocation2 + $0x20] sm:$0xf]
    %v925 = vld [vmem:[#allocation2 + $0x24] sm:$0xf]
    %v926 = vld [vmem:[#allocation2 + $0x28] sm:$0xf]
    %v927 = vld [vmem:[#allocation2 + $0x2c] sm:$0xf]
    %v928 = vld [vmem:[#allocation2 + $0x30] sm:$0xf]
    %v929 = vld [vmem:[#allocation2 + $0x34] sm:$0xf]
    %v930 = vld [vmem:[#allocation2 + $0x38] sm:$0xf]
    %v931 = vld [vmem:[#allocation2 + $0x3c] sm:$0xf]
    %v932 = vld [vmem:[#allocation2 + $0x40] sm:$0xf]
    %v933 = vld [vmem:[#allocation2 + $0x44] sm:$0xf]
    %v934 = vld [vmem:[#allocation2 + $0x48] sm:$0xf]
    %v935 = vld [vmem:[#allocation2 + $0x4c] sm:$0xf]
    %v936 = vld [vmem:[#allocation2 + $0x50] sm:$0xf]
    %v937 = vld [vmem:[#allocation2 + $0x54] sm:$0xf]
    %v938 = vld [vmem:[#allocation2 + $0x58] sm:$0xf]
    %v939 = vld [vmem:[#allocation2 + $0x5c] sm:$0xf]
    %v940 = vld [vmem:[#allocation2 + $0x60] sm:$0xf]
    %v941 = vld [vmem:[#allocation2 + $0x64] sm:$0xf]
    %v942 = vld [vmem:[#allocation2 + $0x68] sm:$0xf]
    %v943 = vld [vmem:[#allocation2 + $0x6c] sm:$0xf]
    %v944 = vld [vmem:[#allocation2 + $0x70] sm:$0xf]
    %v945 = vld [vmem:[#allocation2 + $0x74] sm:$0xf]
    %v946 = vld [vmem:[#allocation2 + $0x78] sm:$0xf]
    %v947 = vld [vmem:[#allocation2 + $0x7c] sm:$0xf]
    %v948 = vld [vmem:[%s2] sm:$0x1]
    %v950 = vlaneseq
    %v951 = vshrl.u32 %v950, 7
    %v952 = vsub.s32 0, %v951
    %v953 = vrot.slane %v948, %v952
    %v987 = vunpack.c.l.b16 %v916
    %v988 = vunpack.c.l.b16 %v917
    %v989 = vunpack.c.l.b16 %v918
    %v990 = vunpack.c.l.b16 %v919
    %v991 = vunpack.c.l.b16 %v920
    %v992 = vunpack.c.l.b16 %v921
    %v993 = vunpack.c.l.b16 %v922
    %v994 = vunpack.c.l.b16 %v923
    %v995 = vunpack.c.l.b16 %v924
    %v996 = vunpack.c.l.b16 %v925
    %v997 = vunpack.c.l.b16 %v926
    %v998 = vunpack.c.l.b16 %v927
    %v999 = vunpack.c.l.b16 %v928
    %v1000 = vunpack.c.l.b16 %v929
    %v1001 = vunpack.c.l.b16 %v930
    %v1002 = vunpack.c.l.b16 %v931
    %v1003 = vunpack.c.l.b16 %v932
    %v1004 = vunpack.c.l.b16 %v933
    %v1005 = vunpack.c.l.b16 %v934
    %v1006 = vunpack.c.l.b16 %v935
    %v1007 = vunpack.c.l.b16 %v936
    %v1008 = vunpack.c.l.b16 %v937
    %v1009 = vunpack.c.l.b16 %v938
    %v1010 = vunpack.c.l.b16 %v939
    %v1011 = vunpack.c.l.b16 %v940
    %v1012 = vunpack.c.l.b16 %v941
    %v1013 = vunpack.c.l.b16 %v942
    %v1014 = vunpack.c.l.b16 %v943
    %v1015 = vunpack.c.l.b16 %v944
    %v1016 = vunpack.c.l.b16 %v945
    %v1017 = vunpack.c.l.b16 %v946
    %v1018 = vunpack.c.l.b16 %v947
    %v1019 = vpack.c.b16 %v988, %v987
    %v1020 = vpack.c.b16 %v990, %v989
    %v1021 = vpack.c.b16 %v992, %v991
    %v1022 = vpack.c.b16 %v994, %v993
    %v1023 = vpack.c.b16 %v996, %v995
    %v1024 = vpack.c.b16 %v998, %v997
    %v1025 = vpack.c.b16 %v1000, %v999
    %v1026 = vpack.c.b16 %v1002, %v1001
    %v1027 = vpack.c.b16 %v1004, %v1003
    %v1028 = vpack.c.b16 %v1006, %v1005
    %v1029 = vpack.c.b16 %v1008, %v1007
    %v1030 = vpack.c.b16 %v1010, %v1009
    %v1031 = vpack.c.b16 %v1012, %v1011
    %v1032 = vpack.c.b16 %v1014, %v1013
    %v1033 = vpack.c.b16 %v1016, %v1015
    %v1034 = vpack.c.b16 %v1018, %v1017
    %1051 = vmatprep.subr.bf16.mxu0 0
    %1052 = vmatpush1.bf16.msra.mxu0 %v1019
    %1053 = vmatprep.subr.bf16.mxu0 0
    %1054 = vmatpush1.bf16.msra.mxu0 %v1020
    %1055 = vmatprep.subr.bf16.mxu0 0
    %1056 = vmatpush1.bf16.msra.mxu0 %v1021
    %1057 = vmatprep.subr.bf16.mxu0 0
    %1058 = vmatpush1.bf16.msra.mxu0 %v1022
    %1059 = vmatprep.subr.bf16.mxu0 0
    %1060 = vmatpush1.bf16.msra.mxu0 %v1023
    %1061 = vmatprep.subr.bf16.mxu0 0
    %1062 = vmatpush1.bf16.msra.mxu0 %v1024
    %1063 = vmatprep.subr.bf16.mxu0 0
    %1064 = vmatpush1.bf16.msra.mxu0 %v1025
    %1065 = vmatprep.subr.bf16.mxu0 0
    %1066 = vmatpush1.bf16.msra.mxu0 %v1026
    %1067 = vmatprep.subr.bf16.mxu0 0
    %1068 = vmatpush1.bf16.msra.mxu0 %v1027
    %1069 = vmatprep.subr.bf16.mxu0 0
    %1070 = vmatpush1.bf16.msra.mxu0 %v1028
    %1071 = vmatprep.subr.bf16.mxu0 0
    %1072 = vmatpush1.bf16.msra.mxu0 %v1029
    %1073 = vmatprep.subr.bf16.mxu0 0
    %1074 = vmatpush1.bf16.msra.mxu0 %v1030
    %1075 = vmatprep.subr.bf16.mxu0 0
    %1076 = vmatpush1.bf16.msra.mxu0 %v1031
    %1077 = vmatprep.subr.bf16.mxu0 0
    %1078 = vmatpush1.bf16.msra.mxu0 %v1032
    %1079 = vmatprep.subr.bf16.mxu0 0
    %1080 = vmatpush1.bf16.msra.mxu0 %v1033
    %1081 = vmatprep.subr.bf16.mxu0 0
    %1082 = vmatpush1.bf16.msra.mxu0 %v1034
    %1083 = vmatprep.mubr.bf16.mxu0 %v915
    %1084 = vmatmul.mubr.bf16.gmra.mrb[0].mxu0 %v914
    %v1085 = vpop.f32.mrb[0].mxu0
    %v1086 = vadd.f32 %v953, %v1085
    %v1087 = vpop.f32.mrb[0].mxu0
    %v1088 = vpop.f32.mrb[0].mxu0
    %v1089 = vadd.f32 %v953, %v1088
    %v1090 = vpop.f32.mrb[0].mxu0
    %1091 = vdwg.mxu0
    %v1092 = vxor.u32 %v1086, 2147483648
    %v1093 = vxor.u32 %v1089, 2147483648
    %v1094 = vmul.f32 %v1092, 1.442695
    %v1095 = vpow.pop %v1094
    %v1096 = vmul.f32 %v1093, 1.442695
    %v1097 = vpow.pop %v1096
    %v1098 = vadd.f32 %v1095, 1.0
    %v1099 = vadd.f32 %v1097, 1.0
    %v1100 = vrcp.pop %v1098
    %v1101 = vmul.f32 1.0, %v1100
    %v1102 = vrcp.pop %v1099
    %v1103 = vmul.f32 1.0, %v1102
    %v1104 = vmul.f32 %v1086, %v1101
    %v1105 = vmul.f32 %v1089, %v1103
    %v1106 = vpack.c.bf16 %v1105, %v1104
    %v1107 = vld [vmem:[#allocation5] sm:$0xf]
    %v1108 = vld [vmem:[#allocation5 + $0x4] sm:$0xf]
    %v1109 = vld [vmem:[#allocation5 + $0x8] sm:$0xf]
    %v1110 = vld [vmem:[#allocation5 + $0xc] sm:$0xf]
    %v1111 = vld [vmem:[#allocation5 + $0x10] sm:$0xf]
    %v1112 = vld [vmem:[#allocation5 + $0x14] sm:$0xf]
    %v1113 = vld [vmem:[#allocation5 + $0x18] sm:$0xf]
    %v1114 = vld [vmem:[#allocation5 + $0x1c] sm:$0xf]
    %v1115 = vld [vmem:[#allocation5 + $0x20] sm:$0xf]
    %v1116 = vld [vmem:[#allocation5 + $0x24] sm:$0xf]
    %v1117 = vld [vmem:[#allocation5 + $0x28] sm:$0xf]
    %v1118 = vld [vmem:[#allocation5 + $0x2c] sm:$0xf]
    %v1119 = vld [vmem:[#allocation5 + $0x30] sm:$0xf]
    %v1120 = vld [vmem:[#allocation5 + $0x34] sm:$0xf]
    %v1121 = vld [vmem:[#allocation5 + $0x38] sm:$0xf]
    %v1122 = vld [vmem:[#allocation5 + $0x3c] sm:$0xf]
    %v1123 = vld [vmem:[%s4] sm:$0x1]
    %v1125 = vlaneseq
    %v1126 = vshrl.u32 %v1125, 7
    %v1127 = vsub.s32 0, %v1126
    %v1128 = vrot.slane %v1123, %v1127
    %v1146 = vunpack.c.l.b16 %v1107
    %v1147 = vunpack.c.l.b16 %v1108
    %v1148 = vunpack.c.l.b16 %v1109
    %v1149 = vunpack.c.l.b16 %v1110
    %v1150 = vunpack.c.l.b16 %v1111
    %v1151 = vunpack.c.l.b16 %v1112
    %v1152 = vunpack.c.l.b16 %v1113
    %v1153 = vunpack.c.l.b16 %v1114
    %v1154 = vunpack.c.l.b16 %v1115
    %v1155 = vunpack.c.l.b16 %v1116
    %v1156 = vunpack.c.l.b16 %v1117
    %v1157 = vunpack.c.l.b16 %v1118
    %v1158 = vunpack.c.l.b16 %v1119
    %v1159 = vunpack.c.l.b16 %v1120
    %v1160 = vunpack.c.l.b16 %v1121
    %v1161 = vunpack.c.l.b16 %v1122
    %v1162 = vpack.c.b16 %v1147, %v1146
    %v1163 = vpack.c.b16 %v1149, %v1148
    %v1164 = vpack.c.b16 %v1151, %v1150
    %v1165 = vpack.c.b16 %v1153, %v1152
    %v1166 = vpack.c.b16 %v1155, %v1154
    %v1167 = vpack.c.b16 %v1157, %v1156
    %v1168 = vpack.c.b16 %v1159, %v1158
    %v1169 = vpack.c.b16 %v1161, %v1160
    %1178 = vmatprep.subr.bf16.mxu0 0
    %1179 = vmatpush1.bf16.msra.mxu0 %v1162
    %1180 = vmatprep.subr.bf16.mxu0 0
    %1181 = vmatpush1.bf16.msra.mxu0 %v1163
    %1182 = vmatprep.subr.bf16.mxu0 0
    %1183 = vmatpush1.bf16.msra.mxu0 %v1164
    %1184 = vmatprep.subr.bf16.mxu0 0
    %1185 = vmatpush1.bf16.msra.mxu0 %v1165
    %1186 = vmatprep.subr.bf16.mxu0 0
    %1187 = vmatpush1.bf16.msra.mxu0 %v1166
    %1188 = vmatprep.subr.bf16.mxu0 0
    %1189 = vmatpush1.bf16.msra.mxu0 %v1167
    %1190 = vmatprep.subr.bf16.mxu0 0
    %1191 = vmatpush1.bf16.msra.mxu0 %v1168
    %1192 = vmatprep.subr.bf16.mxu0 0
    %1193 = vmatpush1.bf16.msra.mxu0 %v1169
    %1194 = vmatprep.subr.bf16.mxu0 0
    %1195 = vmatpush1.bf16.msra.mxu0 0
    %1196 = vmatprep.subr.bf16.mxu0 0
    %1197 = vmatpush1.bf16.msra.mxu0 0
    %1198 = vmatprep.subr.bf16.mxu0 0
    %1199 = vmatpush1.bf16.msra.mxu0 0
    %1200 = vmatprep.subr.bf16.mxu0 0
    %1201 = vmatpush1.bf16.msra.mxu0 0
    %1202 = vmatprep.subr.bf16.mxu0 0
    %1203 = vmatpush1.bf16.msra.mxu0 0
    %1204 = vmatprep.subr.bf16.mxu0 0
    %1205 = vmatpush1.bf16.msra.mxu0 0
    %1206 = vmatprep.subr.bf16.mxu0 0
    %1207 = vmatpush1.bf16.msra.mxu0 0
    %1208 = vmatprep.subr.bf16.mxu0 0
    %1209 = vmatpush1.bf16.msra.mxu0 0
    %1210 = vmatprep.mubr.bf16.mxu0 0
    %1211 = vmatmul.mubr.bf16.gmra.mrb[0].mxu0 %v1106
    %v1212 = vpop.f32.mrb[0].mxu0
    %v1213 = vadd.f32 %v1128, %v1212
    %v1214 = vpop.f32.mrb[0].mxu0
    %v1215 = vpop.f32.mrb[0].mxu0
    %v1216 = vadd.f32 %v1128, %v1215
    %v1217 = vpop.f32.mrb[0].mxu0
    %1218 = vdwg.mxu0
    %1219 = vst [vmem:[#allocation7] sm:$0xff] %v1213
    %1220 = vst [vmem:[#allocation7 + $0x8] sm:$0xff] %v1216
    // Predicated region
    $region30: #{tpu_custom_call.1} parent=1 // pred_check
      _
    $region31: #{tpu_custom_call.1} parent=1 // pred_check_branch
      %1222 = sbr.rel (0) target = $region33
    $region32: #{tpu_custom_call.1} parent=1 // pred_region
      %s1224 = ssub.s32 256, 256
      %1225 = vsyncadd [#allocation4], %s1224
      %s1226 = sshll.u32 [#allocation7], 4
      %s1227 = int_to_ptr.vmem [resolvable:$true] %s1226
      %1232 = dma.vmem_to_hbm [thread:$0]  %s1227, 256, %s5, [#allocation4], 128, 128, 8
    $region33: #{tpu_custom_call.1} parent=1 // pred_fallthru
      _
    // Predicated region
    $region34: #{tpu_custom_call.1} parent=1 // pred_check
      _
    $region35: #{tpu_custom_call.1} parent=1 // pred_check_branch
      %1234 = sbr.rel (0) target = $region37
    $region36: #{tpu_custom_call.1} parent=1 // pred_region
      %1235 = dma.done [#allocation4], 256
    $region37: #{tpu_custom_call.1} parent=1 // pred_fallthru
      _
    %1236 = vsyncpa [#allocation3], 1
    %1237 = vsyncpa [#allocation6], 1
    %1238 = vsyncpa [#allocation4], 1

</llo_original>
